<compile_context>
chip_gen: v6e
topology: v6e:2x2x1
jax: 0.10.0
libtpu: 0.0.40
codegen_flags: <defaults>
</compile_context>

<pallas_src>
import functools
import math

import jax
import jax.numpy as jnp
from jax import lax
from jax.experimental import pallas as pl
from jax.experimental.pallas import tpu as pltpu


_LN_EPS = 1e-6  # matches nn.LayerNorm(d_in, eps=1e-06) in the PyTorch module


def _layer_norm(v, gamma, beta, eps=_LN_EPS):
    # PyTorch LayerNorm: biased variance over the last dim (f32 math).
    mu = jnp.mean(v, axis=-1, keepdims=True)
    var = jnp.mean(jnp.square(v - mu), axis=-1, keepdims=True)
    return (v - mu) * lax.rsqrt(var + eps) * gamma + beta


def feedforward_kernel(
    x1_ref, x2_ref,
    wdt_ref, wdb_ref, bd_ref,   # downsample weight split: [d_in,d_in] x2, bias [1,d_in]
    w1_ref, b1_ref,             # w_1: [d_in,d_hid], [1,d_hid]
    w2_ref, b2_ref,             # w_2: [d_hid,d_in], [1,d_in]
    g_ref, beta_ref,            # layer_norm affine: [1,d_in] each
    o_ref,
    *, matmul_dtype,
):
    tm, d_in = o_ref.shape

    # Hoist gamma/beta broadcasts once; both LayerNorm calls reuse them.
    gamma = jnp.broadcast_to(g_ref[...], (tm, d_in))
    beta = jnp.broadcast_to(beta_ref[...], (tm, d_in))

    # tanh(cat(x1, x2)) @ Wd == tanh(x1) @ Wd_top + tanh(x2) @ Wd_bot
    # -> two MXU pushes into the same f32 accumulator, no concat/lane relayout.
    t1 = jnp.tanh(x1_ref[...].astype(jnp.float32)).astype(matmul_dtype)
    t2 = jnp.tanh(x2_ref[...].astype(jnp.float32)).astype(matmul_dtype)
    x = (
        jnp.dot(t1, wdt_ref[...], preferred_element_type=jnp.float32)
        + jnp.dot(t2, wdb_ref[...], preferred_element_type=jnp.float32)
        + bd_ref[...].astype(jnp.float32)
    )
    x = jnp.maximum(x, 0.0)

    # layer_norm in f32; save residual in f32.
    x = _layer_norm(x, gamma, beta)
    residual = x

    # x = w_2(relu(w_1(x))) — matmul inputs in matmul_dtype, f32 accumulation.
    h = jnp.dot(x.astype(matmul_dtype), w1_ref[...],
                preferred_element_type=jnp.float32) + b1_ref[...].astype(jnp.float32)
    h = jnp.maximum(h, 0.0)
    y = jnp.dot(h.astype(matmul_dtype), w2_ref[...],
                preferred_element_type=jnp.float32) + b2_ref[...].astype(jnp.float32)

    # dropout(p=0.1) is identity in eval mode.
    # TODO(synk): training-mode dropout would need pltpu.prng_seed/prng_random_bits.

    # NOTE: d_in < 128 means this store is lane-masked; padding the feature dim
    # to 128 (with a masked LayerNorm) is a further optimization left unmeasured.
    o_ref[...] = _layer_norm(y + residual, gamma, beta).astype(o_ref.dtype)


def _pick_tile_m(n_rows, max_tile=512):
    # M (rows) is the only dimension we can make MXU/vreg-shaped at small
    # d_in/d_hid, so take the largest row tile up to 512; double-buffered
    # 512-row f32 tiles at these feature widths stay far inside the scoped
    # VMEM budget on v5e/v6e/v7x.
    return n_rows if n_rows <= max_tile else max_tile


@functools.partial(jax.jit, static_argnames=("matmul_dtype",))
def feedforward(x1, x2, params, *, matmul_dtype=jnp.float32):
    *lead, d_in = x1.shape
    n = math.prod(lead) if lead else 1
    x1f = x1.reshape(n, d_in)
    x2f = x2.reshape(n, d_in)

    tile_m = _pick_tile_m(n)
    n_pad = pl.cdiv(n, tile_m) * tile_m
    if n_pad != n:
        pad = ((0, n_pad - n), (0, 0))
        x1f = jnp.pad(x1f, pad)
        x2f = jnp.pad(x2f, pad)
    grid = (n_pad // tile_m,)

    # Split downsample weight into its x1/x2 halves; cast matmul operands so the
    # weight DMA carries the (possibly bf16) matmul dtype.
    wd = params["wd"]
    wd_top = wd[:d_in].astype(matmul_dtype)
    wd_bot = wd[d_in:].astype(matmul_dtype)
    w1 = params["w1"].astype(matmul_dtype)
    w2 = params["w2"].astype(matmul_dtype)
    d_hid = w1.shape[1]

    row_spec = pl.BlockSpec((tile_m, d_in), lambda i: (i, 0))
    full = lambda shape: pl.BlockSpec(shape, lambda i: (0, 0))  # resident block

    kernel = functools.partial(feedforward_kernel, matmul_dtype=matmul_dtype)
    out = pl.pallas_call(
        kernel,
        out_shape=jax.ShapeDtypeStruct((n_pad, d_in), x1.dtype),
        grid=grid,
        in_specs=[
            row_spec, row_spec,                        # x1, x2 row tiles
            full((d_in, d_in)), full((d_in, d_in)),    # wd_top, wd_bot
            full((1, d_in)),                           # bd
            full((d_in, d_hid)), full((1, d_hid)),     # w1, b1
            full((d_hid, d_in)), full((1, d_in)),      # w2, b2
            full((1, d_in)), full((1, d_in)),          # gamma, beta
        ],
        out_specs=row_spec,
        compiler_params=pltpu.CompilerParams(
            dimension_semantics=("parallel",),         # megacore sharding on v7x
            vmem_limit_bytes=48 * 1024 * 1024,         # headroom even on v7x (64 MiB)
        ),
    )(
        x1f, x2f, wd_top, wd_bot, params["bd"],
        w1, params["b1"], w2, params["b2"],
        params["gamma"], params["beta"],
    )
    return out[:n].reshape(*lead, d_in)


def init_params(key, d_in, d_hid):
    ks = jax.random.split(key, 6)
    # PyTorch Linear stores W as [out, in]; we keep them transposed [in, out].
    wd = jax.random.normal(ks[0], (2 * d_in, d_in), jnp.float32) * 0.05
    bd = jax.random.normal(ks[1], (1, d_in), jnp.float32) * 0.05
    w1 = jax.random.normal(ks[2], (d_in, d_hid), jnp.float32) * 0.05
    b1 = jax.random.normal(ks[3], (1, d_hid), jnp.float32) * 0.05
    w2 = jax.random.normal(ks[4], (d_hid, d_in), jnp.float32) * 0.05
    b2 = jax.random.normal(ks[5], (1, d_in), jnp.float32) * 0.05
    gamma = jnp.ones((1, d_in), jnp.float32)
    beta = jnp.zeros((1, d_in), jnp.float32)
    return dict(wd=wd, bd=bd, w1=w1, b1=b1, w2=w2, b2=b2, gamma=gamma, beta=beta)


def _reference(x1, x2, p):
    x = jnp.tanh(jnp.concatenate([x1, x2], axis=-1))
    x = jnp.maximum(x @ p["wd"] + p["bd"][0], 0.0)
    x = _layer_norm(x, p["gamma"][0], p["beta"][0])
    r = x
    h = jnp.maximum(x @ p["w1"] + p["b1"][0], 0.0)
    y = h @ p["w2"] + p["b2"][0]
    return _layer_norm(y + r, p["gamma"][0], p["beta"][0])


if __name__ == "__main__":
    batch, seq, d_in, d_hid = 2, 8, 32, 64
    key = jax.random.PRNGKey(0)
    k1, k2, kp = jax.random.split(key, 3)
    x1 = jax.random.normal(k1, (batch, seq, d_in), jnp.float32)
    x2 = jax.random.normal(k2, (batch, seq, d_in), jnp.float32)
    params = init_params(kp, d_in, d_hid)

    expected = _reference(x1, x2, params)

    # f32 matmul path: tight numerical check.
    out_f32 = feedforward(x1, x2, params, matmul_dtype=jnp.float32)
    jax.block_until_ready(out_f32)
    assert jnp.allclose(out_f32, expected, atol=1e-4, rtol=1e-4), "f32 mismatch vs ref"

    # bf16 matmul path (the perf config for v5e/v6e/v7x): loose numerical check,
    # LayerNorm still f32 so only the dots see bf16 rounding.
    out_bf16 = feedforward(x1, x2, params, matmul_dtype=jnp.bfloat16)
    jax.block_until_ready(out_bf16)
    assert jnp.allclose(out_bf16, expected, atol=1e-1, rtol=1e-1), "bf16 mismatch vs ref"

    # multi-tile / padded-rows path: n = 1200 rows -> 3 grid steps of 512 rows.
    kb1, kb2 = jax.random.split(jax.random.PRNGKey(1))
    xb1 = jax.random.normal(kb1, (3, 400, d_in), jnp.float32)
    xb2 = jax.random.normal(kb2, (3, 400, d_in), jnp.float32)
    out_big = feedforward(xb1, xb2, params, matmul_dtype=jnp.float32)
    jax.block_until_ready(out_big)
    expected_big = _reference(xb1, xb2, params)
    assert jnp.allclose(out_big, expected_big, atol=1e-4, rtol=1e-4), "tiled mismatch vs ref"

    print("KERNEL_OK")
</pallas_src>

<mosaic_0001>
module attributes {stable_mosaic.version = 11 : i64} {
  func.func @feedforward_kernel(%arg0: i32, %arg1: memref<16x32xf32, #tpu.memory_space<vmem>>, %arg2: memref<16x32xf32, #tpu.memory_space<vmem>>, %arg3: memref<32x32xf32, #tpu.memory_space<vmem>>, %arg4: memref<32x32xf32, #tpu.memory_space<vmem>>, %arg5: memref<1x32xf32, #tpu.memory_space<vmem>>, %arg6: memref<32x64xf32, #tpu.memory_space<vmem>>, %arg7: memref<1x64xf32, #tpu.memory_space<vmem>>, %arg8: memref<64x32xf32, #tpu.memory_space<vmem>>, %arg9: memref<1x32xf32, #tpu.memory_space<vmem>>, %arg10: memref<1x32xf32, #tpu.memory_space<vmem>>, %arg11: memref<1x32xf32, #tpu.memory_space<vmem>>, %arg12: memref<16x32xf32, #tpu.memory_space<vmem>>) attributes {dimension_semantics = [#tpu.dimension_semantics<parallel>], iteration_bounds = array<i64: 1>, scalar_prefetch = 0 : i64, scratch_operands = 0 : i64, tpu.core_type = #tpu.core_type<tc>, window_params = [{transform_indices = @transform_0, window_bounds = array<i64: 16, 32>}, {transform_indices = @transform_1, window_bounds = array<i64: 16, 32>}, {pipeline_mode = #tpu.pipeline_mode<synchronous>, transform_indices = @transform_2, window_bounds = array<i64: 32, 32>}, {pipeline_mode = #tpu.pipeline_mode<synchronous>, transform_indices = @transform_3, window_bounds = array<i64: 32, 32>}, {pipeline_mode = #tpu.pipeline_mode<synchronous>, transform_indices = @transform_4, window_bounds = array<i64: 1, 32>}, {pipeline_mode = #tpu.pipeline_mode<synchronous>, transform_indices = @transform_5, window_bounds = array<i64: 32, 64>}, {pipeline_mode = #tpu.pipeline_mode<synchronous>, transform_indices = @transform_6, window_bounds = array<i64: 1, 64>}, {pipeline_mode = #tpu.pipeline_mode<synchronous>, transform_indices = @transform_7, window_bounds = array<i64: 64, 32>}, {pipeline_mode = #tpu.pipeline_mode<synchronous>, transform_indices = @transform_8, window_bounds = array<i64: 1, 32>}, {pipeline_mode = #tpu.pipeline_mode<synchronous>, transform_indices = @transform_9, window_bounds = array<i64: 1, 32>}, {pipeline_mode = #tpu.pipeline_mode<synchronous>, transform_indices = @transform_10, window_bounds = array<i64: 1, 32>}, {transform_indices = @transform_11, window_bounds = array<i64: 16, 32>}]} {
    %c0 = arith.constant 0 : index
    %c0_0 = arith.constant 0 : index
    %0 = vector.load %arg10[%c0, %c0_0] : memref<1x32xf32, #tpu.memory_space<vmem>>, vector<1x32xf32>
    %1 = vector.shape_cast %0 : vector<1x32xf32> to vector<1x32xf32>
    %2 = vector.broadcast %1 : vector<1x32xf32> to vector<16x32xf32>
    %c0_1 = arith.constant 0 : index
    %c0_2 = arith.constant 0 : index
    %3 = vector.load %arg11[%c0_1, %c0_2] : memref<1x32xf32, #tpu.memory_space<vmem>>, vector<1x32xf32>
    %4 = vector.shape_cast %3 : vector<1x32xf32> to vector<1x32xf32>
    %5 = vector.broadcast %4 : vector<1x32xf32> to vector<16x32xf32>
    %c0_3 = arith.constant 0 : index
    %c0_4 = arith.constant 0 : index
    %6 = vector.load %arg1[%c0_3, %c0_4] : memref<16x32xf32, #tpu.memory_space<vmem>>, vector<16x32xf32>
    %7 = math.tanh %6 : vector<16x32xf32>
    %c0_5 = arith.constant 0 : index
    %c0_6 = arith.constant 0 : index
    %8 = vector.load %arg2[%c0_5, %c0_6] : memref<16x32xf32, #tpu.memory_space<vmem>>, vector<16x32xf32>
    %9 = math.tanh %8 : vector<16x32xf32>
    %c0_7 = arith.constant 0 : index
    %c0_8 = arith.constant 0 : index
    %10 = vector.load %arg3[%c0_7, %c0_8] : memref<32x32xf32, #tpu.memory_space<vmem>>, vector<32x32xf32>
    %cst = arith.constant dense<0.000000e+00> : vector<16x32xf32>
    %11 = tpu.matmul %7, %10, %cst {dimension_numbers = #tpu.dot_dimension_numbers<[1], [0], [0], [1], [0, 0, 1, 1], [], []>} : vector<16x32xf32>, vector<32x32xf32>, vector<16x32xf32> -> vector<16x32xf32>
    %c0_9 = arith.constant 0 : index
    %c0_10 = arith.constant 0 : index
    %12 = vector.load %arg4[%c0_9, %c0_10] : memref<32x32xf32, #tpu.memory_space<vmem>>, vector<32x32xf32>
    %cst_11 = arith.constant dense<0.000000e+00> : vector<16x32xf32>
    %13 = tpu.matmul %9, %12, %cst_11 {dimension_numbers = #tpu.dot_dimension_numbers<[1], [0], [0], [1], [0, 0, 1, 1], [], []>} : vector<16x32xf32>, vector<32x32xf32>, vector<16x32xf32> -> vector<16x32xf32>
    %14 = arith.addf %11, %13 : vector<16x32xf32>
    %c0_12 = arith.constant 0 : index
    %c0_13 = arith.constant 0 : index
    %15 = vector.load %arg5[%c0_12, %c0_13] : memref<1x32xf32, #tpu.memory_space<vmem>>, vector<1x32xf32>
    %16 = vector.broadcast %15 : vector<1x32xf32> to vector<16x32xf32>
    %17 = arith.addf %14, %16 : vector<16x32xf32>
    %cst_14 = arith.constant 0.000000e+00 : f32
    %18 = vector.broadcast %cst_14 : f32 to vector<16x32xf32>
    %19 = arith.maximumf %17, %18 : vector<16x32xf32>
    %cst_15 = arith.constant dense<0.000000e+00> : vector<16xf32>
    %20 = vector.multi_reduction <add>, %19, %cst_15 [1] : vector<16x32xf32> to vector<16xf32>
    %21 = vector.shape_cast %20 : vector<16xf32> to vector<16x1xf32>
    %cst_16 = arith.constant 3.200000e+01 : f32
    %22 = vector.broadcast %cst_16 : f32 to vector<16x1xf32>
    %23 = arith.divf %21, %22 : vector<16x1xf32>
    %24 = vector.broadcast %23 : vector<16x1xf32> to vector<16x32xf32>
    %25 = arith.subf %19, %24 : vector<16x32xf32>
    %26 = arith.mulf %25, %25 : vector<16x32xf32>
    %cst_17 = arith.constant dense<0.000000e+00> : vector<16xf32>
    %27 = vector.multi_reduction <add>, %26, %cst_17 [1] : vector<16x32xf32> to vector<16xf32>
    %28 = vector.shape_cast %27 : vector<16xf32> to vector<16x1xf32>
    %cst_18 = arith.constant 3.200000e+01 : f32
    %29 = vector.broadcast %cst_18 : f32 to vector<16x1xf32>
    %30 = arith.divf %28, %29 : vector<16x1xf32>
    %31 = vector.broadcast %23 : vector<16x1xf32> to vector<16x32xf32>
    %32 = arith.subf %19, %31 : vector<16x32xf32>
    %cst_19 = arith.constant 9.99999997E-7 : f32
    %33 = vector.broadcast %cst_19 : f32 to vector<16x1xf32>
    %34 = arith.addf %30, %33 : vector<16x1xf32>
    %35 = math.rsqrt %34 : vector<16x1xf32>
    %36 = vector.broadcast %35 : vector<16x1xf32> to vector<16x32xf32>
    %37 = arith.mulf %32, %36 : vector<16x32xf32>
    %38 = arith.mulf %37, %2 : vector<16x32xf32>
    %39 = arith.addf %38, %5 : vector<16x32xf32>
    %c0_20 = arith.constant 0 : index
    %c0_21 = arith.constant 0 : index
    %40 = vector.load %arg6[%c0_20, %c0_21] : memref<32x64xf32, #tpu.memory_space<vmem>>, vector<32x64xf32>
    %cst_22 = arith.constant dense<0.000000e+00> : vector<16x64xf32>
    %41 = tpu.matmul %39, %40, %cst_22 {dimension_numbers = #tpu.dot_dimension_numbers<[1], [0], [0], [1], [0, 0, 1, 1], [], []>} : vector<16x32xf32>, vector<32x64xf32>, vector<16x64xf32> -> vector<16x64xf32>
    %c0_23 = arith.constant 0 : index
    %c0_24 = arith.constant 0 : index
    %42 = vector.load %arg7[%c0_23, %c0_24] : memref<1x64xf32, #tpu.memory_space<vmem>>, vector<1x64xf32>
    %43 = vector.broadcast %42 : vector<1x64xf32> to vector<16x64xf32>
    %44 = arith.addf %41, %43 : vector<16x64xf32>
    %cst_25 = arith.constant 0.000000e+00 : f32
    %45 = vector.broadcast %cst_25 : f32 to vector<16x64xf32>
    %46 = arith.maximumf %44, %45 : vector<16x64xf32>
    %c0_26 = arith.constant 0 : index
    %c0_27 = arith.constant 0 : index
    %47 = vector.load %arg8[%c0_26, %c0_27] : memref<64x32xf32, #tpu.memory_space<vmem>>, vector<64x32xf32>
    %cst_28 = arith.constant dense<0.000000e+00> : vector<16x32xf32>
    %48 = tpu.matmul %46, %47, %cst_28 {dimension_numbers = #tpu.dot_dimension_numbers<[1], [0], [0], [1], [0, 0, 1, 1], [], []>} : vector<16x64xf32>, vector<64x32xf32>, vector<16x32xf32> -> vector<16x32xf32>
    %c0_29 = arith.constant 0 : index
    %c0_30 = arith.constant 0 : index
    %49 = vector.load %arg9[%c0_29, %c0_30] : memref<1x32xf32, #tpu.memory_space<vmem>>, vector<1x32xf32>
    %50 = vector.broadcast %49 : vector<1x32xf32> to vector<16x32xf32>
    %51 = arith.addf %48, %50 : vector<16x32xf32>
    %52 = arith.addf %51, %39 : vector<16x32xf32>
    %cst_31 = arith.constant dense<0.000000e+00> : vector<16xf32>
    %53 = vector.multi_reduction <add>, %52, %cst_31 [1] : vector<16x32xf32> to vector<16xf32>
    %54 = vector.shape_cast %53 : vector<16xf32> to vector<16x1xf32>
    %cst_32 = arith.constant 3.200000e+01 : f32
    %55 = vector.broadcast %cst_32 : f32 to vector<16x1xf32>
    %56 = arith.divf %54, %55 : vector<16x1xf32>
    %57 = vector.broadcast %56 : vector<16x1xf32> to vector<16x32xf32>
    %58 = arith.subf %52, %57 : vector<16x32xf32>
    %59 = arith.mulf %58, %58 : vector<16x32xf32>
    %cst_33 = arith.constant dense<0.000000e+00> : vector<16xf32>
    %60 = vector.multi_reduction <add>, %59, %cst_33 [1] : vector<16x32xf32> to vector<16xf32>
    %61 = vector.shape_cast %60 : vector<16xf32> to vector<16x1xf32>
    %cst_34 = arith.constant 3.200000e+01 : f32
    %62 = vector.broadcast %cst_34 : f32 to vector<16x1xf32>
    %63 = arith.divf %61, %62 : vector<16x1xf32>
    %64 = vector.broadcast %56 : vector<16x1xf32> to vector<16x32xf32>
    %65 = arith.subf %52, %64 : vector<16x32xf32>
    %cst_35 = arith.constant 9.99999997E-7 : f32
    %66 = vector.broadcast %cst_35 : f32 to vector<16x1xf32>
    %67 = arith.addf %63, %66 : vector<16x1xf32>
    %68 = math.rsqrt %67 : vector<16x1xf32>
    %69 = vector.broadcast %68 : vector<16x1xf32> to vector<16x32xf32>
    %70 = arith.mulf %65, %69 : vector<16x32xf32>
    %71 = arith.mulf %70, %2 : vector<16x32xf32>
    %72 = arith.addf %71, %5 : vector<16x32xf32>
    %c0_36 = arith.constant 0 : index
    %c0_37 = arith.constant 0 : index
    %73 = vector.load %arg12[%c0_36, %c0_37] : memref<16x32xf32, #tpu.memory_space<vmem>>, vector<16x32xf32>
    tpu.vector_store %arg12[%c0_36, %c0_37], %72 {strides = array<i32>} : memref<16x32xf32, #tpu.memory_space<vmem>>, vector<16x32xf32>,
    return
  }
  func.func @transform_0(%arg0: i32) -> (i32, i32) {
    %c0_i32 = arith.constant 0 : i32
    %c0_i32_0 = arith.constant 0 : i32
    return %arg0, %c0_i32 : i32, i32
  }
  func.func @transform_1(%arg0: i32) -> (i32, i32) {
    %c0_i32 = arith.constant 0 : i32
    %c0_i32_0 = arith.constant 0 : i32
    return %arg0, %c0_i32 : i32, i32
  }
  func.func @transform_2(%arg0: i32) -> (i32, i32) {
    %c0_i32 = arith.constant 0 : i32
    %c0_i32_0 = arith.constant 0 : i32
    %c0_i32_1 = arith.constant 0 : i32
    return %c0_i32, %c0_i32_0 : i32, i32
  }
  func.func @transform_3(%arg0: i32) -> (i32, i32) {
    %c0_i32 = arith.constant 0 : i32
    %c0_i32_0 = arith.constant 0 : i32
    %c0_i32_1 = arith.constant 0 : i32
    return %c0_i32, %c0_i32_0 : i32, i32
  }
  func.func @transform_4(%arg0: i32) -> (i32, i32) {
    %c0_i32 = arith.constant 0 : i32
    %c0_i32_0 = arith.constant 0 : i32
    %c0_i32_1 = arith.constant 0 : i32
    return %c0_i32, %c0_i32_0 : i32, i32
  }
  func.func @transform_5(%arg0: i32) -> (i32, i32) {
    %c0_i32 = arith.constant 0 : i32
    %c0_i32_0 = arith.constant 0 : i32
    %c0_i32_1 = arith.constant 0 : i32
    return %c0_i32, %c0_i32_0 : i32, i32
  }
  func.func @transform_6(%arg0: i32) -> (i32, i32) {
    %c0_i32 = arith.constant 0 : i32
    %c0_i32_0 = arith.constant 0 : i32
    %c0_i32_1 = arith.constant 0 : i32
    return %c0_i32, %c0_i32_0 : i32, i32
  }
  func.func @transform_7(%arg0: i32) -> (i32, i32) {
    %c0_i32 = arith.constant 0 : i32
    %c0_i32_0 = arith.constant 0 : i32
    %c0_i32_1 = arith.constant 0 : i32
    return %c0_i32, %c0_i32_0 : i32, i32
  }
  func.func @transform_8(%arg0: i32) -> (i32, i32) {
    %c0_i32 = arith.constant 0 : i32
    %c0_i32_0 = arith.constant 0 : i32
    %c0_i32_1 = arith.constant 0 : i32
    return %c0_i32, %c0_i32_0 : i32, i32
  }
  func.func @transform_9(%arg0: i32) -> (i32, i32) {
    %c0_i32 = arith.constant 0 : i32
    %c0_i32_0 = arith.constant 0 : i32
    %c0_i32_1 = arith.constant 0 : i32
    return %c0_i32, %c0_i32_0 : i32, i32
  }
  func.func @transform_10(%arg0: i32) -> (i32, i32) {
    %c0_i32 = arith.constant 0 : i32
    %c0_i32_0 = arith.constant 0 : i32
    %c0_i32_1 = arith.constant 0 : i32
    return %c0_i32, %c0_i32_0 : i32, i32
  }
  func.func @transform_11(%arg0: i32) -> (i32, i32) {
    %c0_i32 = arith.constant 0 : i32
    %c0_i32_0 = arith.constant 0 : i32
    return %arg0, %c0_i32 : i32, i32
  }
}

</mosaic_0001>

<llo_original>
// kernel: feedforward.1
$region0: #{feedforward.1}
  #allocation0 [shape = 'u32[]', space=smem, size = 0x4, offset = 0x4, fixed_abs, tag = 'smem constant byte address 0x4 - core index']
  #allocation1 [shape = 'u32[144,128]{1,0:T(1,128)}', space=vmem, size = 0x12000, scoped, tag = 'internal scratch']
  %s0 = inlined_call_operand.vmem [shape: f32[16,32], index: 0, kind: input, shape index: {}]
  %s1 = inlined_call_operand.vmem [shape: f32[16,32], index: 1, kind: input, shape index: {}]
  %s2 = inlined_call_operand.vmem [shape: f32[32,32], index: 2, kind: input, shape index: {}]
  %s3 = inlined_call_operand.vmem [shape: f32[32,32], index: 3, kind: input, shape index: {}]
  %s4 = inlined_call_operand.vmem [shape: f32[1,32], index: 4, kind: input, shape index: {}]
  %s5 = inlined_call_operand.vmem [shape: f32[32,64], index: 5, kind: input, shape index: {}]
  %s6 = inlined_call_operand.vmem [shape: f32[1,64], index: 6, kind: input, shape index: {}]
  %s7 = inlined_call_operand.vmem [shape: f32[64,32], index: 7, kind: input, shape index: {}]
  %s8 = inlined_call_operand.vmem [shape: f32[1,32], index: 8, kind: input, shape index: {}]
  %s9 = inlined_call_operand.vmem [shape: f32[1,32], index: 9, kind: input, shape index: {}]
  %s10 = inlined_call_operand.vmem [shape: f32[1,32], index: 10, kind: input, shape index: {}]
  %s11 = inlined_call_operand.hbm [shape: f32[16,32], index: 11, kind: output, shape index: {}]
  %s12 = sld [smem:[#allocation0]]
  $region54: #{feedforward.1} parent=0
    _
  %s14 = ssub.s32 1, %s12
  %s15 = scalar_select 0, %s14, %s12
  $region1: #{feedforward.1} parent=0
    #allocation2 [shape = 'u8[8192]{0}', space=vmem, size = 0x2000, scoped, tag = 'output window, operand 0, single buffered']
    #allocation3 [shape = 's32[1]{0}', space=sflag, size = 0x4, scoped, tag = 'scoped memory for feedforward.1']
    %16 = vsyncpa [#allocation3], 0
    // Predicated region
    $region2: #{feedforward.1} parent=1 // pred_check
      _
    $region3: #{feedforward.1} parent=1 // pred_check_branch
      %18 = sbr.rel (0) target = $region5
    $region4: #{feedforward.1} parent=1 // pred_region
      _
    $region5: #{feedforward.1} parent=1 // pred_fallthru
      _
    // Predicated region
    $region6: #{feedforward.1} parent=1 // pred_check
      _
    $region7: #{feedforward.1} parent=1 // pred_check_branch
      %20 = sbr.rel (0) target = $region9
    $region8: #{feedforward.1} parent=1 // pred_region
      _
    $region9: #{feedforward.1} parent=1 // pred_fallthru
      _
    // Predicated region
    $region10: #{feedforward.1} parent=1 // pred_check
      _
    $region11: #{feedforward.1} parent=1 // pred_check_branch
      %22 = sbr.rel (0) target = $region13
    $region12: #{feedforward.1} parent=1 // pred_region
      _
    $region13: #{feedforward.1} parent=1 // pred_fallthru
      _
    // Predicated region
    $region14: #{feedforward.1} parent=1 // pred_check
      _
    $region15: #{feedforward.1} parent=1 // pred_check_branch
      %24 = sbr.rel (0) target = $region17
    $region16: #{feedforward.1} parent=1 // pred_region
      _
    $region17: #{feedforward.1} parent=1 // pred_fallthru
      _
    // Predicated region
    $region18: #{feedforward.1} parent=1 // pred_check
      _
    $region19: #{feedforward.1} parent=1 // pred_check_branch
      %26 = sbr.rel (0) target = $region21
    $region20: #{feedforward.1} parent=1 // pred_region
      _
    $region21: #{feedforward.1} parent=1 // pred_fallthru
      _
    // Predicated region
    $region22: #{feedforward.1} parent=1 // pred_check
      _
    $region23: #{feedforward.1} parent=1 // pred_check_branch
      %28 = sbr.rel (0) target = $region25
    $region24: #{feedforward.1} parent=1 // pred_region
      _
    $region25: #{feedforward.1} parent=1 // pred_fallthru
      _
    // Predicated region
    $region26: #{feedforward.1} parent=1 // pred_check
      _
    $region27: #{feedforward.1} parent=1 // pred_check_branch
      %30 = sbr.rel (0) target = $region29
    $region28: #{feedforward.1} parent=1 // pred_region
      _
    $region29: #{feedforward.1} parent=1 // pred_fallthru
      _
    // Predicated region
    $region30: #{feedforward.1} parent=1 // pred_check
      _
    $region31: #{feedforward.1} parent=1 // pred_check_branch
      %32 = sbr.rel (0) target = $region33
    $region32: #{feedforward.1} parent=1 // pred_region
      _
    $region33: #{feedforward.1} parent=1 // pred_fallthru
      _
    // Predicated region
    $region34: #{feedforward.1} parent=1 // pred_check
      _
    $region35: #{feedforward.1} parent=1 // pred_check_branch
      %34 = sbr.rel (0) target = $region37
    $region36: #{feedforward.1} parent=1 // pred_region
      _
    $region37: #{feedforward.1} parent=1 // pred_fallthru
      _
    // Predicated region
    $region38: #{feedforward.1} parent=1 // pred_check
      _
    $region39: #{feedforward.1} parent=1 // pred_check_branch
      %36 = sbr.rel (0) target = $region41
    $region40: #{feedforward.1} parent=1 // pred_region
      _
    $region41: #{feedforward.1} parent=1 // pred_fallthru
      _
    // Predicated region
    $region42: #{feedforward.1} parent=1 // pred_check
      _
    $region43: #{feedforward.1} parent=1 // pred_check_branch
      %38 = sbr.rel (0) target = $region45
    $region44: #{feedforward.1} parent=1 // pred_region
      _
    $region45: #{feedforward.1} parent=1 // pred_fallthru
      _
    %v39 = vld [vmem:[%s9] sm:$0x1]
    %v41 = vlaneseq
    %v42 = vshrl.u32 %v41, 7
    %v43 = vsub.s32 0, %v42
    %v44 = vrot.slane %v39, %v43
    %v46 = vld [vmem:[%s10] sm:$0x1]
    %v48 = vlaneseq
    %v49 = vshrl.u32 %v48, 7
    %v50 = vsub.s32 0, %v49
    %v51 = vrot.slane %v46, %v50
    %v53 = vld [vmem:[%s0] sm:$0xff]
    %v54 = vld [vmem:[%s0 + $0x8] sm:$0xff]
    %v55 = vtanh.pop %v53
    %v56 = vtanh.pop %v54
    %v57 = vld [vmem:[%s1] sm:$0xff]
    %v58 = vld [vmem:[%s1 + $0x8] sm:$0xff]
    %v59 = vtanh.pop %v57
    %v60 = vtanh.pop %v58
    %v61 = vld [vmem:[%s2] sm:$0xff]
    %v62 = vld [vmem:[%s2 + $0x8] sm:$0xff]
    %v63 = vld [vmem:[%s2 + $0x10] sm:$0xff]
    %v64 = vld [vmem:[%s2 + $0x18] sm:$0xff]
    %v65 = vld [vmem:[%s3] sm:$0xff]
    %v66 = vld [vmem:[%s3 + $0x8] sm:$0xff]
    %v67 = vld [vmem:[%s3 + $0x10] sm:$0xff]
    %v68 = vld [vmem:[%s3 + $0x18] sm:$0xff]
    %vm69 = vcmask 261120
    %v71 = vsel %vm69, %v59, 0
    %v74 = vsel %vm69, %v60, 0
    %76 = vmatprep.subr.mxu0 0.0
    %77 = vmatpush1.msra.mxu0 0.0
    %78 = vmatprep.subr.mxu0 0.0
    %79 = vmatpush1.msra.mxu0 0.0
    %80 = vmatprep.subr.mxu0 0.0
    %81 = vmatpush1.msra.mxu0 0.0
    %82 = vmatprep.subr.mxu0 0.0
    %83 = vmatpush1.msra.mxu0 0.0
    %84 = vmatprep.subr.mxu0 0.0
    %85 = vmatpush1.msra.mxu0 0.0
    %86 = vmatprep.subr.mxu0 0.0
    %87 = vmatpush1.msra.mxu0 0.0
    %88 = vmatprep.subr.mxu0 0.0
    %89 = vmatpush1.msra.mxu0 0.0
    %90 = vmatprep.subr.mxu0 0.0
    %91 = vmatpush1.msra.mxu0 0.0
    %92 = vmatprep.subr.mxu0 0.0
    %93 = vmatpush1.msra.mxu0 0.0
    %94 = vmatprep.subr.mxu0 0.0
    %95 = vmatpush1.msra.mxu0 0.0
    %96 = vmatprep.subr.mxu0 0.0
    %97 = vmatpush1.msra.mxu0 0.0
    %98 = vmatprep.subr.mxu0 0.0
    %99 = vmatpush1.msra.mxu0 0.0
    %100 = vmatprep.subr.mxu0 0.0
    %101 = vmatpush1.msra.mxu0 %v68
    %102 = vmatprep.subr.mxu0 0.0
    %103 = vmatpush1.msra.mxu0 %v67
    %104 = vmatprep.subr.mxu0 0.0
    %105 = vmatpush1.msra.mxu0 %v66
    %106 = vmatprep.subr.mxu0 0.0
    %107 = vmatpush1.msra.mxu0 %v65
    %108 = vmatprep.subr.mxu0 0.0
    %109 = vmatpush2.msra.mxu0 0.0
    %110 = vmatprep.subr.mxu0 0.0
    %111 = vmatpush2.msra.mxu0 0.0
    %112 = vmatprep.subr.mxu0 0.0
    %113 = vmatpush2.msra.mxu0 0.0
    %114 = vmatprep.subr.mxu0 0.0
    %115 = vmatpush2.msra.mxu0 0.0
    %116 = vmatprep.subr.mxu0 0.0
    %117 = vmatpush2.msra.mxu0 0.0
    %118 = vmatprep.subr.mxu0 0.0
    %119 = vmatpush2.msra.mxu0 0.0
    %120 = vmatprep.subr.mxu0 0.0
    %121 = vmatpush2.msra.mxu0 0.0
    %122 = vmatprep.subr.mxu0 0.0
    %123 = vmatpush2.msra.mxu0 0.0
    %124 = vmatprep.subr.mxu0 0.0
    %125 = vmatpush2.msra.mxu0 0.0
    %126 = vmatprep.subr.mxu0 0.0
    %127 = vmatpush2.msra.mxu0 0.0
    %128 = vmatprep.subr.mxu0 0.0
    %129 = vmatpush2.msra.mxu0 0.0
    %130 = vmatprep.subr.mxu0 0.0
    %131 = vmatpush2.msra.mxu0 0.0
    %132 = vmatprep.subr.mxu0 0.0
    %133 = vmatpush2.msra.mxu0 0.0
    %134 = vmatprep.subr.mxu0 0.0
    %135 = vmatpush2.msra.mxu0 0.0
    %136 = vmatprep.subr.mxu0 0.0
    %137 = vmatpush2.msra.mxu0 0.0
    %138 = vmatprep.subr.mxu0 0.0
    %139 = vmatpush2.msra.mxu0 0.0
    %140 = vmatprep.mubr.f32.mxu0 0.0
    %141 = vmatmul.mubr.f32.gmra.mxu0 %v71
    %v142 = vpop.f32.mrf.mxu0
    %v143 = vadd.f32 0.0, %v142
    %v144 = vpop.f32.mrf.mxu0
    %145 = vmatprep.mubr.f32.mxu0 0.0
    %146 = vmatmul.mubr.f32.gmra.mxu0 %v74
    %v147 = vpop.f32.mrf.mxu0
    %v148 = vadd.f32 0.0, %v147
    %v149 = vpop.f32.mrf.mxu0
    %150 = vdwg.mxu0
    %v152 = vsel %vm69, %v55, 0
    %v155 = vsel %vm69, %v56, 0
    %157 = vmatprep.subr.mxu0 0.0
    %158 = vmatpush1.msra.mxu0 0.0
    %159 = vmatprep.subr.mxu0 0.0
    %160 = vmatpush1.msra.mxu0 0.0
    %161 = vmatprep.subr.mxu0 0.0
    %162 = vmatpush1.msra.mxu0 0.0
    %163 = vmatprep.subr.mxu0 0.0
    %164 = vmatpush1.msra.mxu0 0.0
    %165 = vmatprep.subr.mxu0 0.0
    %166 = vmatpush1.msra.mxu0 0.0
    %167 = vmatprep.subr.mxu0 0.0
    %168 = vmatpush1.msra.mxu0 0.0
    %169 = vmatprep.subr.mxu0 0.0
    %170 = vmatpush1.msra.mxu0 0.0
    %171 = vmatprep.subr.mxu0 0.0
    %172 = vmatpush1.msra.mxu0 0.0
    %173 = vmatprep.subr.mxu0 0.0
    %174 = vmatpush1.msra.mxu0 0.0
    %175 = vmatprep.subr.mxu0 0.0
    %176 = vmatpush1.msra.mxu0 0.0
    %177 = vmatprep.subr.mxu0 0.0
    %178 = vmatpush1.msra.mxu0 0.0
    %179 = vmatprep.subr.mxu0 0.0
    %180 = vmatpush1.msra.mxu0 0.0
    %181 = vmatprep.subr.mxu0 0.0
    %182 = vmatpush1.msra.mxu0 %v64
    %183 = vmatprep.subr.mxu0 0.0
    %184 = vmatpush1.msra.mxu0 %v63
    %185 = vmatprep.subr.mxu0 0.0
    %186 = vmatpush1.msra.mxu0 %v62
    %187 = vmatprep.subr.mxu0 0.0
    %188 = vmatpush1.msra.mxu0 %v61
    %189 = vmatprep.subr.mxu0 0.0
    %190 = vmatpush2.msra.mxu0 0.0
    %191 = vmatprep.subr.mxu0 0.0
    %192 = vmatpush2.msra.mxu0 0.0
    %193 = vmatprep.subr.mxu0 0.0
    %194 = vmatpush2.msra.mxu0 0.0
    %195 = vmatprep.subr.mxu0 0.0
    %196 = vmatpush2.msra.mxu0 0.0
    %197 = vmatprep.subr.mxu0 0.0
    %198 = vmatpush2.msra.mxu0 0.0
    %199 = vmatprep.subr.mxu0 0.0
    %200 = vmatpush2.msra.mxu0 0.0
    %201 = vmatprep.subr.mxu0 0.0
    %202 = vmatpush2.msra.mxu0 0.0
    %203 = vmatprep.subr.mxu0 0.0
    %204 = vmatpush2.msra.mxu0 0.0
    %205 = vmatprep.subr.mxu0 0.0
    %206 = vmatpush2.msra.mxu0 0.0
    %207 = vmatprep.subr.mxu0 0.0
    %208 = vmatpush2.msra.mxu0 0.0
    %209 = vmatprep.subr.mxu0 0.0
    %210 = vmatpush2.msra.mxu0 0.0
    %211 = vmatprep.subr.mxu0 0.0
    %212 = vmatpush2.msra.mxu0 0.0
    %213 = vmatprep.subr.mxu0 0.0
    %214 = vmatpush2.msra.mxu0 0.0
    %215 = vmatprep.subr.mxu0 0.0
    %216 = vmatpush2.msra.mxu0 0.0
    %217 = vmatprep.subr.mxu0 0.0
    %218 = vmatpush2.msra.mxu0 0.0
    %219 = vmatprep.subr.mxu0 0.0
    %220 = vmatpush2.msra.mxu0 0.0
    %221 = vmatprep.mubr.f32.mxu0 0.0
    %222 = vmatmul.mubr.f32.gmra.mxu0 %v152
    %v223 = vpop.f32.mrf.mxu0
    %v224 = vadd.f32 %v143, %v223
    %v225 = vpop.f32.mrf.mxu0
    %226 = vmatprep.mubr.f32.mxu0 0.0
    %227 = vmatmul.mubr.f32.gmra.mxu0 %v155
    %v228 = vpop.f32.mrf.mxu0
    %v229 = vadd.f32 %v148, %v228
    %v230 = vpop.f32.mrf.mxu0
    %231 = vdwg.mxu0
    %v232 = vld [vmem:[%s4] sm:$0x1]
    %v234 = vlaneseq
    %v235 = vshrl.u32 %v234, 7
    %v236 = vsub.s32 0, %v235
    %v237 = vrot.slane %v232, %v236
    %v239 = vadd.f32 %v224, %v237
    %v240 = vadd.f32 %v229, %v237
    %v241 = vmax.f32 %v239, 0.0
    %v242 = vmax.f32 %v240, 0.0
    %v243 = vsel %vm69, %v241, 0.0
    %244 = vadd.xlane.f32.xlu0 %v243
    %v245 = vpop.xlane.xlu0 %244
    %v246 = vsel %vm69, %v242, 0.0
    %247 = vadd.xlane.f32.xlu0 %v246
    %v248 = vpop.xlane.xlu0 %247
    %v249 = vrcp.pop 32.0
    %v250 = vmul.f32 %v245, %v249
    %v251 = vmul.f32 %v248, %v249
    %v252 = vsub.f32 %v241, %v250
    %v253 = vsub.f32 %v242, %v251
    %v254 = vmul.f32 %v252, %v252
    %v255 = vmul.f32 %v253, %v253
    %v256 = vsel %vm69, %v254, 0.0
    %257 = vadd.xlane.f32.xlu0 %v256
    %v258 = vpop.xlane.xlu0 %257
    %v259 = vsel %vm69, %v255, 0.0
    %260 = vadd.xlane.f32.xlu0 %v259
    %v261 = vpop.xlane.xlu0 %260
    %v262 = vmul.f32 %v258, %v249
    %v263 = vmul.f32 %v261, %v249
    %v264 = vadd.f32 %v262, 1e-06
    %v265 = vadd.f32 %v263, 1e-06
    %v266 = vrsqrt.pop %v264
    %v267 = vrsqrt.pop %v265
    %v268 = vmul.f32 %v252, %v266
    %v269 = vmul.f32 %v253, %v267
    %v270 = vmul.f32 %v268, %v44
    %v271 = vmul.f32 %v269, %v44
    %v272 = vadd.f32 %v270, %v51
    %v273 = vadd.f32 %v271, %v51
    %v274 = vld [vmem:[%s5] sm:$0xff]
    %v275 = vld [vmem:[%s5 + $0x8] sm:$0xff]
    %v276 = vld [vmem:[%s5 + $0x10] sm:$0xff]
    %v277 = vld [vmem:[%s5 + $0x18] sm:$0xff]
    %v278 = vld [vmem:[%s6] sm:$0x1]
    %v280 = vlaneseq
    %v281 = vshrl.u32 %v280, 7
    %v282 = vsub.s32 0, %v281
    %v283 = vrot.slane %v278, %v282
    %v286 = vsel %vm69, %v272, 0
    %v289 = vsel %vm69, %v273, 0
    %291 = vmatprep.subr.mxu0 0.0
    %292 = vmatpush1.msra.mxu0 0.0
    %293 = vmatprep.subr.mxu0 0.0
    %294 = vmatpush1.msra.mxu0 0.0
    %295 = vmatprep.subr.mxu0 0.0
    %296 = vmatpush1.msra.mxu0 0.0
    %297 = vmatprep.subr.mxu0 0.0
    %298 = vmatpush1.msra.mxu0 0.0
    %299 = vmatprep.subr.mxu0 0.0
    %300 = vmatpush1.msra.mxu0 0.0
    %301 = vmatprep.subr.mxu0 0.0
    %302 = vmatpush1.msra.mxu0 0.0
    %303 = vmatprep.subr.mxu0 0.0
    %304 = vmatpush1.msra.mxu0 0.0
    %305 = vmatprep.subr.mxu0 0.0
    %306 = vmatpush1.msra.mxu0 0.0
    %307 = vmatprep.subr.mxu0 0.0
    %308 = vmatpush1.msra.mxu0 0.0
    %309 = vmatprep.subr.mxu0 0.0
    %310 = vmatpush1.msra.mxu0 0.0
    %311 = vmatprep.subr.mxu0 0.0
    %312 = vmatpush1.msra.mxu0 0.0
    %313 = vmatprep.subr.mxu0 0.0
    %314 = vmatpush1.msra.mxu0 0.0
    %315 = vmatprep.subr.mxu0 0.0
    %316 = vmatpush1.msra.mxu0 %v277
    %317 = vmatprep.subr.mxu0 0.0
    %318 = vmatpush1.msra.mxu0 %v276
    %319 = vmatprep.subr.mxu0 0.0
    %320 = vmatpush1.msra.mxu0 %v275
    %321 = vmatprep.subr.mxu0 0.0
    %322 = vmatpush1.msra.mxu0 %v274
    %323 = vmatprep.subr.mxu0 0.0
    %324 = vmatpush2.msra.mxu0 0.0
    %325 = vmatprep.subr.mxu0 0.0
    %326 = vmatpush2.msra.mxu0 0.0
    %327 = vmatprep.subr.mxu0 0.0
    %328 = vmatpush2.msra.mxu0 0.0
    %329 = vmatprep.subr.mxu0 0.0
    %330 = vmatpush2.msra.mxu0 0.0
    %331 = vmatprep.subr.mxu0 0.0
    %332 = vmatpush2.msra.mxu0 0.0
    %333 = vmatprep.subr.mxu0 0.0
    %334 = vmatpush2.msra.mxu0 0.0
    %335 = vmatprep.subr.mxu0 0.0
    %336 = vmatpush2.msra.mxu0 0.0
    %337 = vmatprep.subr.mxu0 0.0
    %338 = vmatpush2.msra.mxu0 0.0
    %339 = vmatprep.subr.mxu0 0.0
    %340 = vmatpush2.msra.mxu0 0.0
    %341 = vmatprep.subr.mxu0 0.0
    %342 = vmatpush2.msra.mxu0 0.0
    %343 = vmatprep.subr.mxu0 0.0
    %344 = vmatpush2.msra.mxu0 0.0
    %345 = vmatprep.subr.mxu0 0.0
    %346 = vmatpush2.msra.mxu0 0.0
    %347 = vmatprep.subr.mxu0 0.0
    %348 = vmatpush2.msra.mxu0 0.0
    %349 = vmatprep.subr.mxu0 0.0
    %350 = vmatpush2.msra.mxu0 0.0
    %351 = vmatprep.subr.mxu0 0.0
    %352 = vmatpush2.msra.mxu0 0.0
    %353 = vmatprep.subr.mxu0 0.0
    %354 = vmatpush2.msra.mxu0 0.0
    %355 = vmatprep.mubr.f32.mxu0 0.0
    %356 = vmatmul.mubr.f32.gmra.mxu0 %v286
    %v357 = vpop.f32.mrf.mxu0
    %v358 = vadd.f32 %v283, %v357
    %v359 = vpop.f32.mrf.mxu0
    %360 = vmatprep.mubr.f32.mxu0 0.0
    %361 = vmatmul.mubr.f32.gmra.mxu0 %v289
    %v362 = vpop.f32.mrf.mxu0
    %v363 = vadd.f32 %v283, %v362
    %v364 = vpop.f32.mrf.mxu0
    %365 = vdwg.mxu0
    %v366 = vmax.f32 %v358, 0.0
    %v367 = vmax.f32 %v363, 0.0
    %v368 = vld [vmem:[%s7] sm:$0xff]
    %v369 = vld [vmem:[%s7 + $0x8] sm:$0xff]
    %v370 = vld [vmem:[%s7 + $0x10] sm:$0xff]
    %v371 = vld [vmem:[%s7 + $0x18] sm:$0xff]
    %v372 = vld [vmem:[%s7 + $0x20] sm:$0xff]
    %v373 = vld [vmem:[%s7 + $0x28] sm:$0xff]
    %v374 = vld [vmem:[%s7 + $0x30] sm:$0xff]
    %v375 = vld [vmem:[%s7 + $0x38] sm:$0xff]
    %v376 = vld [vmem:[%s8] sm:$0x1]
    %v378 = vlaneseq
    %v379 = vshrl.u32 %v378, 7
    %v380 = vsub.s32 0, %v379
    %v381 = vrot.slane %v376, %v380
    %vm383 = vcmask 523264
    %v385 = vsel %vm383, %v366, 0
    %v388 = vsel %vm383, %v367, 0
    %390 = vmatprep.subr.mxu0 0.0
    %391 = vmatpush1.msra.mxu0 0.0
    %392 = vmatprep.subr.mxu0 0.0
    %393 = vmatpush1.msra.mxu0 0.0
    %394 = vmatprep.subr.mxu0 0.0
    %395 = vmatpush1.msra.mxu0 0.0
    %396 = vmatprep.subr.mxu0 0.0
    %397 = vmatpush1.msra.mxu0 0.0
    %398 = vmatprep.subr.mxu0 0.0
    %399 = vmatpush1.msra.mxu0 0.0
    %400 = vmatprep.subr.mxu0 0.0
    %401 = vmatpush1.msra.mxu0 0.0
    %402 = vmatprep.subr.mxu0 0.0
    %403 = vmatpush1.msra.mxu0 0.0
    %404 = vmatprep.subr.mxu0 0.0
    %405 = vmatpush1.msra.mxu0 0.0
    %406 = vmatprep.subr.mxu0 0.0
    %407 = vmatpush1.msra.mxu0 %v375
    %408 = vmatprep.subr.mxu0 0.0
    %409 = vmatpush1.msra.mxu0 %v374
    %410 = vmatprep.subr.mxu0 0.0
    %411 = vmatpush1.msra.mxu0 %v373
    %412 = vmatprep.subr.mxu0 0.0
    %413 = vmatpush1.msra.mxu0 %v372
    %414 = vmatprep.subr.mxu0 0.0
    %415 = vmatpush1.msra.mxu0 %v371
    %416 = vmatprep.subr.mxu0 0.0
    %417 = vmatpush1.msra.mxu0 %v370
    %418 = vmatprep.subr.mxu0 0.0
    %419 = vmatpush1.msra.mxu0 %v369
    %420 = vmatprep.subr.mxu0 0.0
    %421 = vmatpush1.msra.mxu0 %v368
    %422 = vmatprep.subr.mxu0 0.0
    %423 = vmatpush2.msra.mxu0 0.0
    %424 = vmatprep.subr.mxu0 0.0
    %425 = vmatpush2.msra.mxu0 0.0
    %426 = vmatprep.subr.mxu0 0.0
    %427 = vmatpush2.msra.mxu0 0.0
    %428 = vmatprep.subr.mxu0 0.0
    %429 = vmatpush2.msra.mxu0 0.0
    %430 = vmatprep.subr.mxu0 0.0
    %431 = vmatpush2.msra.mxu0 0.0
    %432 = vmatprep.subr.mxu0 0.0
    %433 = vmatpush2.msra.mxu0 0.0
    %434 = vmatprep.subr.mxu0 0.0
    %435 = vmatpush2.msra.mxu0 0.0
    %436 = vmatprep.subr.mxu0 0.0
    %437 = vmatpush2.msra.mxu0 0.0
    %438 = vmatprep.subr.mxu0 0.0
    %439 = vmatpush2.msra.mxu0 0.0
    %440 = vmatprep.subr.mxu0 0.0
    %441 = vmatpush2.msra.mxu0 0.0
    %442 = vmatprep.subr.mxu0 0.0
    %443 = vmatpush2.msra.mxu0 0.0
    %444 = vmatprep.subr.mxu0 0.0
    %445 = vmatpush2.msra.mxu0 0.0
    %446 = vmatprep.subr.mxu0 0.0
    %447 = vmatpush2.msra.mxu0 0.0
    %448 = vmatprep.subr.mxu0 0.0
    %449 = vmatpush2.msra.mxu0 0.0
    %450 = vmatprep.subr.mxu0 0.0
    %451 = vmatpush2.msra.mxu0 0.0
    %452 = vmatprep.subr.mxu0 0.0
    %453 = vmatpush2.msra.mxu0 0.0
    %454 = vmatprep.mubr.f32.mxu0 0.0
    %455 = vmatmul.mubr.f32.gmra.mxu0 %v385
    %v456 = vpop.f32.mrf.mxu0
    %v457 = vadd.f32 %v381, %v456
    %v458 = vpop.f32.mrf.mxu0
    %459 = vmatprep.mubr.f32.mxu0 0.0
    %460 = vmatmul.mubr.f32.gmra.mxu0 %v388
    %v461 = vpop.f32.mrf.mxu0
    %v462 = vadd.f32 %v381, %v461
    %v463 = vpop.f32.mrf.mxu0
    %464 = vdwg.mxu0
    %v465 = vadd.f32 %v457, %v272
    %v466 = vadd.f32 %v462, %v273
    %v467 = vsel %vm69, %v465, 0.0
    %468 = vadd.xlane.f32.xlu0 %v467
    %v469 = vpop.xlane.xlu0 %468
    %v470 = vsel %vm69, %v466, 0.0
    %471 = vadd.xlane.f32.xlu0 %v470
    %v472 = vpop.xlane.xlu0 %471
    %v473 = vmul.f32 %v469, %v249
    %v474 = vmul.f32 %v472, %v249
    %v475 = vsub.f32 %v465, %v473
    %v476 = vsub.f32 %v466, %v474
    %v477 = vmul.f32 %v475, %v475
    %v478 = vmul.f32 %v476, %v476
    %v479 = vsel %vm69, %v477, 0.0
    %480 = vadd.xlane.f32.xlu0 %v479
    %v481 = vpop.xlane.xlu0 %480
    %v482 = vsel %vm69, %v478, 0.0
    %483 = vadd.xlane.f32.xlu0 %v482
    %v484 = vpop.xlane.xlu0 %483
    %v485 = vmul.f32 %v481, %v249
    %v486 = vmul.f32 %v484, %v249
    %v487 = vadd.f32 %v485, 1e-06
    %v488 = vadd.f32 %v486, 1e-06
    %v489 = vrsqrt.pop %v487
    %v490 = vrsqrt.pop %v488
    %v491 = vmul.f32 %v475, %v489
    %v492 = vmul.f32 %v476, %v490
    %v493 = vmul.f32 %v491, %v44
    %v494 = vmul.f32 %v492, %v44
    %v495 = vadd.f32 %v493, %v51
    %v496 = vadd.f32 %v494, %v51
    %497 = vst.msk [vmem:[#allocation2] sm:$0xff] %vm69, %v495
    %498 = vst.msk [vmem:[#allocation2 + $0x8] sm:$0xff] %vm69, %v496
    // Predicated region
    $region46: #{feedforward.1} parent=1 // pred_check
      _
    $region47: #{feedforward.1} parent=1 // pred_check_branch
      %500 = sbr.rel (0) target = $region49
    $region48: #{feedforward.1} parent=1 // pred_region
      %s502 = ssub.s32 256, 256
      %503 = vsyncadd [#allocation3], %s502
      %s504 = sshll.u32 [#allocation2], 4
      %s505 = int_to_ptr.vmem [resolvable:$true] %s504
      %510 = dma.vmem_to_hbm [thread:$0]  %s505, 256, %s11, [#allocation3], 128, 128, 8
    $region49: #{feedforward.1} parent=1 // pred_fallthru
      _
    // Predicated region
    $region50: #{feedforward.1} parent=1 // pred_check
      _
    $region51: #{feedforward.1} parent=1 // pred_check_branch
      %512 = sbr.rel (0) target = $region53
    $region52: #{feedforward.1} parent=1 // pred_region
      %513 = dma.done [#allocation3], 256
    $region53: #{feedforward.1} parent=1 // pred_fallthru
      _
    %514 = vsyncpa [#allocation3], 1

</llo_original>
